<compile_context>
chip_gen: v7x
topology: tpu7x:2x2x1
jax: 0.10.0
libtpu: 0.0.40
codegen_flags: <defaults>
</compile_context>

<pallas_src>
import functools

import jax
import jax.numpy as jnp
from jax.experimental import pallas as pl
from jax.experimental.pallas import tpu as pltpu


# ---------------------------------------------------------------------------
# Static layer description
# ---------------------------------------------------------------------------
# Original 10 linear layers of MLP_module:
ENC_DIMS = [256, 128, 64, 32, 16, 3]          # encoder, tanh after all but last
DEC_DIMS = [3, 16, 32, 64, 128, 256]          # decoder, tanh after all but last
ORIG_DIMS = list(zip(ENC_DIMS[:-1], ENC_DIMS[1:])) + list(zip(DEC_DIMS[:-1], DEC_DIMS[1:]))
N_ORIG = len(ORIG_DIMS)                       # 10
ORIG_ACT = [i not in (4, 9) for i in range(N_ORIG)]

# Effective layers after fusing layer 4 (16->3, no act) with layer 5 (3->16):
EFF_IN  = [256, 128, 64, 32, 16, 16, 32, 64, 128]      # noqa: E221
EFF_OUT = [128, 64, 32, 16, 16, 32, 64, 128, 256]
N_EFF = len(EFF_IN)                                    # 9
EFF_ACT = [True] * (N_EFF - 1) + [False]               # tanh after all but last

LANES = 256                                            # slab lane width (max out dim)
ROW_OFFS = []
_off = 0
for _fin in EFF_IN:
    ROW_OFFS.append(_off)
    _off += _fin
TOTAL_W_ROWS = _off                                    # 736 (multiple of 16)


# ---------------------------------------------------------------------------
# Kernel: chains all 9 effective linear layers for one batch tile
# ---------------------------------------------------------------------------
def fused_mlp_kernel(x_ref, w_ref, b_ref, o_ref):
    compute_dtype = w_ref.dtype                        # bf16 on the fast path
    h = x_ref[...]                                     # (TB, 256) f32
    for i in range(N_EFF):
        off, fin, fout = ROW_OFFS[i], EFF_IN[i], EFF_OUT[i]
        w = w_ref[off:off + fin, :fout]                # static slice of packed slab
        # cast only at the MXU boundary; accumulate in f32
        h = jnp.dot(h.astype(compute_dtype), w, preferred_element_type=jnp.float32)
        h = h + b_ref[i:i + 1, :fout]                  # (1, fout) f32 broadcast bias
        if EFF_ACT[i]:
            h = jnp.tanh(h)                            # EUP slot
    o_ref[...] = h.astype(o_ref.dtype)


# ---------------------------------------------------------------------------
# Wrapper: single pallas_call for BOTH descriptors, batch-tiled grid
# ---------------------------------------------------------------------------
def _round_up(x, m):
    return (x + m - 1) // m * m


@functools.partial(jax.jit, static_argnames=("block_rows",))
def mlp_module_forward(desc0, desc1, w_slab, b_slab, *, block_rows=1024):
    """Runs MLP_module.forward: returns (desc0_back, desc1_back).

    block_rows: batch tile size.  512-1024 suits v5e/v6e/v7x (MXU cost scales with
    LHS rows pushed, not with how narrow K/N are, so bigger tiles amortize the fixed
    per-layer pass cost).  It is clamped so that the grid has at least 2 steps
    whenever the padded batch has >= 16 rows (keeps both v7x TensorCores busy).
    """
    n0, n1 = desc0.shape[0], desc1.shape[0]
    n = n0 + n1

    n8 = _round_up(n, 8)
    tb = min(block_rows, n8)
    if n8 >= 16 and n8 // tb < 2:
        tb = _round_up(n8 // 2, 8)                     # guarantee >= 2 grid steps
    n_pad = _round_up(n, tb)
    grid = (n_pad // tb,)

    # Single fused write into the padded f32 activation slab (no concat/astype/pad
    # chain re-reading HBM); astype skipped when inputs are already f32.
    d0 = desc0 if desc0.dtype == jnp.float32 else desc0.astype(jnp.float32)
    d1 = desc1 if desc1.dtype == jnp.float32 else desc1.astype(jnp.float32)
    x = jnp.zeros((n_pad, LANES), jnp.float32)
    x = x.at[:n0].set(d0)
    x = x.at[n0:n].set(d1)

    out = pl.pallas_call(
        fused_mlp_kernel,
        out_shape=jax.ShapeDtypeStruct((n_pad, LANES), jnp.float32),
        grid_spec=pltpu.PrefetchScalarGridSpec(
            num_scalar_prefetch=0,
            grid=grid,
            in_specs=[
                # batch-tiled activations: double-buffered across the grid
                pl.BlockSpec((tb, LANES), lambda i: (i, 0)),
                # packed parameters: constant block index -> loaded once, resident
                pl.BlockSpec(w_slab.shape, lambda i: (0, 0)),
                pl.BlockSpec(b_slab.shape, lambda i: (0, 0)),
            ],
            out_specs=pl.BlockSpec((tb, LANES), lambda i: (i, 0)),
        ),
        compiler_params=pltpu.CompilerParams(
            dimension_semantics=("parallel",),          # batch split across v7x's 2 TCs
            vmem_limit_bytes=32 * 1024 * 1024,          # lets v5e run >=512-row tiles
        ),
    )(x, w_slab, b_slab)

    return out[:n0], out[n0:n0 + n1]


# ---------------------------------------------------------------------------
# Parameter init (PyTorch nn.Linear-style), fusion of layers 4+5, and packing
# ---------------------------------------------------------------------------
def init_params(key):
    """Returns the ORIGINAL 10 layers: weights [in, out] (pre-transposed) and
    biases [1, out], PyTorch-Linear-style uniform init."""
    weights, biases = [], []
    for (fan_in, fan_out) in ORIG_DIMS:
        key, kw, kb = jax.random.split(key, 3)
        bound = 1.0 / jnp.sqrt(jnp.float32(fan_in))
        w = jax.random.uniform(kw, (fan_in, fan_out), jnp.float32, -bound, bound)
        b = jax.random.uniform(kb, (1, fan_out), jnp.float32, -bound, bound)
        weights.append(w)
        biases.append(b)
    return weights, biases


def fuse_and_pack(weights, biases, weight_dtype=jnp.bfloat16):
    """Fuses layers 4 & 5 (no activation between them) in f32, then packs the 9
    effective layers into one weight slab [TOTAL_W_ROWS, 256] (weight_dtype) and
    one bias slab [9, 256] (f32).

    weight_dtype=jnp.bfloat16 (default) halves weight DMA bytes and drives the MXU
    in its native dtype on v6e/v7x; accumulation stays f32 in the kernel.
    Row offsets are all multiples of 16, keeping bf16 sublane tiles aligned.
    """
    w45 = weights[4] @ weights[5]                       # (16, 3) @ (3, 16) -> (16, 16), f32
    b45 = biases[4] @ weights[5] + biases[5]            # (1, 16), f32
    eff_ws = weights[:4] + [w45] + weights[6:]
    eff_bs = biases[:4] + [b45] + biases[6:]

    w_slab = jnp.zeros((TOTAL_W_ROWS, LANES), weight_dtype)
    b_slab = jnp.zeros((N_EFF, LANES), jnp.float32)
    for i, (off, fin, fout) in enumerate(zip(ROW_OFFS, EFF_IN, EFF_OUT)):
        w_slab = w_slab.at[off:off + fin, :fout].set(eff_ws[i].astype(weight_dtype))
        b_slab = b_slab.at[i, :fout].set(eff_bs[i][0])
    return w_slab, b_slab


# ---------------------------------------------------------------------------
# Demo + correctness check against the un-fused 10-layer f32 reference
# ---------------------------------------------------------------------------
if __name__ == "__main__":
    key = jax.random.PRNGKey(0)
    key, k0, k1 = jax.random.split(key, 3)

    B = 8
    desc0 = jax.random.normal(k0, (B, 256), jnp.float32)
    desc1 = jax.random.normal(k1, (B, 256), jnp.float32)

    weights, biases = init_params(key)

    # Pure-JAX reference of the ORIGINAL (un-fused) 10-layer module, f32.
    def ref_forward(x):
        h = x
        for i, (w, b) in enumerate(zip(weights, biases)):
            h = h @ w + b
            if ORIG_ACT[i]:
                h = jnp.tanh(h)
        return h

    r0, r1 = ref_forward(desc0), ref_forward(desc1)

    # 1) f32 weight slab: tight numeric check of the fused kernel itself.
    w32, b32 = fuse_and_pack(weights, biases, weight_dtype=jnp.float32)
    o0_32, o1_32 = mlp_module_forward(desc0, desc1, w32, b32)
    jax.block_until_ready((o0_32, o1_32))
    assert o0_32.shape == (B, 256) and o1_32.shape == (B, 256)
    assert jnp.allclose(o0_32, r0, atol=1e-3, rtol=1e-3)
    assert jnp.allclose(o1_32, r1, atol=1e-3, rtol=1e-3)

    # 2) bf16 weight slab (recommended production path): bf16 rounding compounds
    #    over the 9 chained layers, so use a looser tolerance.
    w16, b16 = fuse_and_pack(weights, biases, weight_dtype=jnp.bfloat16)
    o0, o1 = mlp_module_forward(desc0, desc1, w16, b16)
    jax.block_until_ready((o0, o1))
    assert o0.shape == (B, 256) and o1.shape == (B, 256)
    assert jnp.allclose(o0, r0, atol=5e-2, rtol=5e-2)
    assert jnp.allclose(o1, r1, atol=5e-2, rtol=5e-2)

    print("KERNEL_OK")
</pallas_src>

<mosaic_0001>
module attributes {stable_mosaic.version = 11 : i64} {
  func.func @fused_mlp_kernel(%arg0: i32, %arg1: memref<8x256xf32, #tpu.memory_space<vmem>>, %arg2: memref<736x256xf32, #tpu.memory_space<vmem>>, %arg3: memref<9x256xf32, #tpu.memory_space<vmem>>, %arg4: memref<8x256xf32, #tpu.memory_space<vmem>>) attributes {dimension_semantics = [#tpu.dimension_semantics<parallel>], iteration_bounds = array<i64: 2>, scalar_prefetch = 0 : i64, scratch_operands = 0 : i64, tpu.core_type = #tpu.core_type<tc>, window_params = [{transform_indices = @transform_0, window_bounds = array<i64: 8, 256>}, {pipeline_mode = #tpu.pipeline_mode<synchronous>, transform_indices = @transform_1, window_bounds = array<i64: 736, 256>}, {pipeline_mode = #tpu.pipeline_mode<synchronous>, transform_indices = @transform_2, window_bounds = array<i64: 9, 256>}, {transform_indices = @transform_3, window_bounds = array<i64: 8, 256>}]} {
    %c0 = arith.constant 0 : index
    %c0_0 = arith.constant 0 : index
    %0 = vector.load %arg1[%c0, %c0_0] : memref<8x256xf32, #tpu.memory_space<vmem>>, vector<8x256xf32>
    %c0_1 = arith.constant 0 : index
    %c0_2 = arith.constant 0 : index
    %1 = vector.load %arg2[%c0_1, %c0_2] : memref<736x256xf32, #tpu.memory_space<vmem>>, vector<256x128xf32>
    %cst = arith.constant dense<0.000000e+00> : vector<8x128xf32>
    %2 = tpu.matmul %0, %1, %cst {dimension_numbers = #tpu.dot_dimension_numbers<[1], [0], [0], [1], [0, 0, 1, 1], [], []>} : vector<8x256xf32>, vector<256x128xf32>, vector<8x128xf32> -> vector<8x128xf32>
    %c0_3 = arith.constant 0 : index
    %c0_4 = arith.constant 0 : index
    %3 = vector.load %arg3[%c0_3, %c0_4] : memref<9x256xf32, #tpu.memory_space<vmem>>, vector<1x128xf32>
    %4 = vector.broadcast %3 : vector<1x128xf32> to vector<8x128xf32>
    %5 = arith.addf %2, %4 : vector<8x128xf32>
    %6 = math.tanh %5 : vector<8x128xf32>
    %c256 = arith.constant 256 : index
    %c0_5 = arith.constant 0 : index
    %7 = vector.load %arg2[%c256, %c0_5] : memref<736x256xf32, #tpu.memory_space<vmem>>, vector<128x64xf32>
    %cst_6 = arith.constant dense<0.000000e+00> : vector<8x64xf32>
    %8 = tpu.matmul %6, %7, %cst_6 {dimension_numbers = #tpu.dot_dimension_numbers<[1], [0], [0], [1], [0, 0, 1, 1], [], []>} : vector<8x128xf32>, vector<128x64xf32>, vector<8x64xf32> -> vector<8x64xf32>
    %c1 = arith.constant 1 : index
    %c0_7 = arith.constant 0 : index
    %9 = vector.load %arg3[%c1, %c0_7] : memref<9x256xf32, #tpu.memory_space<vmem>>, vector<1x64xf32>
    %10 = vector.broadcast %9 : vector<1x64xf32> to vector<8x64xf32>
    %11 = arith.addf %8, %10 : vector<8x64xf32>
    %12 = math.tanh %11 : vector<8x64xf32>
    %c384 = arith.constant 384 : index
    %c0_8 = arith.constant 0 : index
    %13 = vector.load %arg2[%c384, %c0_8] : memref<736x256xf32, #tpu.memory_space<vmem>>, vector<64x32xf32>
    %cst_9 = arith.constant dense<0.000000e+00> : vector<8x32xf32>
    %14 = tpu.matmul %12, %13, %cst_9 {dimension_numbers = #tpu.dot_dimension_numbers<[1], [0], [0], [1], [0, 0, 1, 1], [], []>} : vector<8x64xf32>, vector<64x32xf32>, vector<8x32xf32> -> vector<8x32xf32>
    %c2 = arith.constant 2 : index
    %c0_10 = arith.constant 0 : index
    %15 = vector.load %arg3[%c2, %c0_10] : memref<9x256xf32, #tpu.memory_space<vmem>>, vector<1x32xf32>
    %16 = vector.broadcast %15 : vector<1x32xf32> to vector<8x32xf32>
    %17 = arith.addf %14, %16 : vector<8x32xf32>
    %18 = math.tanh %17 : vector<8x32xf32>
    %c448 = arith.constant 448 : index
    %c0_11 = arith.constant 0 : index
    %19 = vector.load %arg2[%c448, %c0_11] : memref<736x256xf32, #tpu.memory_space<vmem>>, vector<32x16xf32>
    %cst_12 = arith.constant dense<0.000000e+00> : vector<8x16xf32>
    %20 = tpu.matmul %18, %19, %cst_12 {dimension_numbers = #tpu.dot_dimension_numbers<[1], [0], [0], [1], [0, 0, 1, 1], [], []>} : vector<8x32xf32>, vector<32x16xf32>, vector<8x16xf32> -> vector<8x16xf32>
    %c3 = arith.constant 3 : index
    %c0_13 = arith.constant 0 : index
    %21 = vector.load %arg3[%c3, %c0_13] : memref<9x256xf32, #tpu.memory_space<vmem>>, vector<1x16xf32>
    %22 = vector.broadcast %21 : vector<1x16xf32> to vector<8x16xf32>
    %23 = arith.addf %20, %22 : vector<8x16xf32>
    %24 = math.tanh %23 : vector<8x16xf32>
    %c480 = arith.constant 480 : index
    %c0_14 = arith.constant 0 : index
    %25 = vector.load %arg2[%c480, %c0_14] : memref<736x256xf32, #tpu.memory_space<vmem>>, vector<16x16xf32>
    %cst_15 = arith.constant dense<0.000000e+00> : vector<8x16xf32>
    %26 = tpu.matmul %24, %25, %cst_15 {dimension_numbers = #tpu.dot_dimension_numbers<[1], [0], [0], [1], [0, 0, 1, 1], [], []>} : vector<8x16xf32>, vector<16x16xf32>, vector<8x16xf32> -> vector<8x16xf32>
    %c4 = arith.constant 4 : index
    %c0_16 = arith.constant 0 : index
    %27 = vector.load %arg3[%c4, %c0_16] : memref<9x256xf32, #tpu.memory_space<vmem>>, vector<1x16xf32>
    %28 = vector.broadcast %27 : vector<1x16xf32> to vector<8x16xf32>
    %29 = arith.addf %26, %28 : vector<8x16xf32>
    %30 = math.tanh %29 : vector<8x16xf32>
    %c496 = arith.constant 496 : index
    %c0_17 = arith.constant 0 : index
    %31 = vector.load %arg2[%c496, %c0_17] : memref<736x256xf32, #tpu.memory_space<vmem>>, vector<16x32xf32>
    %cst_18 = arith.constant dense<0.000000e+00> : vector<8x32xf32>
    %32 = tpu.matmul %30, %31, %cst_18 {dimension_numbers = #tpu.dot_dimension_numbers<[1], [0], [0], [1], [0, 0, 1, 1], [], []>} : vector<8x16xf32>, vector<16x32xf32>, vector<8x32xf32> -> vector<8x32xf32>
    %c5 = arith.constant 5 : index
    %c0_19 = arith.constant 0 : index
    %33 = vector.load %arg3[%c5, %c0_19] : memref<9x256xf32, #tpu.memory_space<vmem>>, vector<1x32xf32>
    %34 = vector.broadcast %33 : vector<1x32xf32> to vector<8x32xf32>
    %35 = arith.addf %32, %34 : vector<8x32xf32>
    %36 = math.tanh %35 : vector<8x32xf32>
    %c512 = arith.constant 512 : index
    %c0_20 = arith.constant 0 : index
    %37 = vector.load %arg2[%c512, %c0_20] : memref<736x256xf32, #tpu.memory_space<vmem>>, vector<32x64xf32>
    %cst_21 = arith.constant dense<0.000000e+00> : vector<8x64xf32>
    %38 = tpu.matmul %36, %37, %cst_21 {dimension_numbers = #tpu.dot_dimension_numbers<[1], [0], [0], [1], [0, 0, 1, 1], [], []>} : vector<8x32xf32>, vector<32x64xf32>, vector<8x64xf32> -> vector<8x64xf32>
    %c6 = arith.constant 6 : index
    %c0_22 = arith.constant 0 : index
    %39 = vector.load %arg3[%c6, %c0_22] : memref<9x256xf32, #tpu.memory_space<vmem>>, vector<1x64xf32>
    %40 = vector.broadcast %39 : vector<1x64xf32> to vector<8x64xf32>
    %41 = arith.addf %38, %40 : vector<8x64xf32>
    %42 = math.tanh %41 : vector<8x64xf32>
    %c544 = arith.constant 544 : index
    %c0_23 = arith.constant 0 : index
    %43 = vector.load %arg2[%c544, %c0_23] : memref<736x256xf32, #tpu.memory_space<vmem>>, vector<64x128xf32>
    %cst_24 = arith.constant dense<0.000000e+00> : vector<8x128xf32>
    %44 = tpu.matmul %42, %43, %cst_24 {dimension_numbers = #tpu.dot_dimension_numbers<[1], [0], [0], [1], [0, 0, 1, 1], [], []>} : vector<8x64xf32>, vector<64x128xf32>, vector<8x128xf32> -> vector<8x128xf32>
    %c7 = arith.constant 7 : index
    %c0_25 = arith.constant 0 : index
    %45 = vector.load %arg3[%c7, %c0_25] : memref<9x256xf32, #tpu.memory_space<vmem>>, vector<1x128xf32>
    %46 = vector.broadcast %45 : vector<1x128xf32> to vector<8x128xf32>
    %47 = arith.addf %44, %46 : vector<8x128xf32>
    %48 = math.tanh %47 : vector<8x128xf32>
    %c608 = arith.constant 608 : index
    %c0_26 = arith.constant 0 : index
    %49 = vector.load %arg2[%c608, %c0_26] : memref<736x256xf32, #tpu.memory_space<vmem>>, vector<128x256xf32>
    %cst_27 = arith.constant dense<0.000000e+00> : vector<8x256xf32>
    %50 = tpu.matmul %48, %49, %cst_27 {dimension_numbers = #tpu.dot_dimension_numbers<[1], [0], [0], [1], [0, 0, 1, 1], [], []>} : vector<8x128xf32>, vector<128x256xf32>, vector<8x256xf32> -> vector<8x256xf32>
    %c8 = arith.constant 8 : index
    %c0_28 = arith.constant 0 : index
    %51 = vector.load %arg3[%c8, %c0_28] : memref<9x256xf32, #tpu.memory_space<vmem>>, vector<1x256xf32>
    %52 = vector.broadcast %51 : vector<1x256xf32> to vector<8x256xf32>
    %53 = arith.addf %50, %52 : vector<8x256xf32>
    %c0_29 = arith.constant 0 : index
    %c0_30 = arith.constant 0 : index
    %54 = vector.load %arg4[%c0_29, %c0_30] : memref<8x256xf32, #tpu.memory_space<vmem>>, vector<8x256xf32>
    tpu.vector_store %arg4[%c0_29, %c0_30], %53 {strides = array<i32>} : memref<8x256xf32, #tpu.memory_space<vmem>>, vector<8x256xf32>,
    return
  }
  func.func @transform_0(%arg0: i32) -> (i32, i32) {
    %c0_i32 = arith.constant 0 : i32
    %c0_i32_0 = arith.constant 0 : i32
    return %arg0, %c0_i32 : i32, i32
  }
  func.func @transform_1(%arg0: i32) -> (i32, i32) {
    %c0_i32 = arith.constant 0 : i32
    %c0_i32_0 = arith.constant 0 : i32
    %c0_i32_1 = arith.constant 0 : i32
    return %c0_i32, %c0_i32_0 : i32, i32
  }
  func.func @transform_2(%arg0: i32) -> (i32, i32) {
    %c0_i32 = arith.constant 0 : i32
    %c0_i32_0 = arith.constant 0 : i32
    %c0_i32_1 = arith.constant 0 : i32
    return %c0_i32, %c0_i32_0 : i32, i32
  }
  func.func @transform_3(%arg0: i32) -> (i32, i32) {
    %c0_i32 = arith.constant 0 : i32
    %c0_i32_0 = arith.constant 0 : i32
    return %arg0, %c0_i32 : i32, i32
  }
}

</mosaic_0001>

<llo_original>
// kernel: mlp_module_forward.1
$region0: #{mlp_module_forward.1}
  #allocation0 [shape = 'u32[]', space=smem, size = 0x4, offset = 0x4, fixed_abs, tag = 'smem constant byte address 0x4 - core index']
  #allocation1 [shape = 'u32[144,128]{1,0:T(1,128)}', space=vmem, size = 0x12000, scoped, tag = 'internal scratch']
  %s0 = inlined_call_operand.vmem [shape: f32[16,256], index: 0, kind: input, shape index: {}]
  %s1 = inlined_call_operand.hbm [shape: f32[736,256], index: 1, kind: input, shape index: {}]
  %s2 = inlined_call_operand.vmem [shape: f32[9,256], index: 2, kind: input, shape index: {}]
  %s3 = inlined_call_operand.vmem [shape: f32[16,256], index: 3, kind: output, shape index: {}]
  %s4 = sld [smem:[#allocation0]]
  $region49: #{mlp_module_forward.1} parent=0
    _
  %s6 = ssub.s32 1, %s4
  %s7 = scalar_select 0, %s6, %s4
  $region1: #{mlp_module_forward.1} parent=0
    #allocation2 [shape = 'u8[753664]{0}', space=vmem, size = 0xb8000, scoped, tag = 'input window, operand 1, single buffered']
    #allocation3 [shape = 's32[2]{0}', space=sflag, size = 0x8, scoped, tag = 'scoped memory for mlp_module_forward.1']
    %8 = vsyncpa [#allocation3], 0
    loop: start=0, step=1, limit=4
    $region2: #{mlp_module_forward.1} parent=1 // loop_pre_header
      _
    $region3: #{mlp_module_forward.1} parent=1 // loop_header
      %s10 = sphi 0, %s14
      %p11 = scmp.ge.s32.totalorder %s10, 4
      %s20 = sphi 0, %s22
      %s23 = sphi 0, %s20
      %s24 = sphi 0, %s23
      %s40 = sphi 0, %s24
      %s44 = sphi 0, %s44
      %s46 = sphi 0, %s44
      %s47 = sphi 0, %s46
      %s61 = sphi 0, %s47
      %s65 = sphi 0, %s65
      %s67 = sphi 0, %s65
      %s68 = sphi 0, %s67
      %s82 = sphi 0, %s68
      %s88 = sphi 0, %s90
      %s91 = sphi 0, %s88
      %s92 = sphi 0, %s91
      %s108 = sphi 0, %s92
    $region4: #{mlp_module_forward.1} parent=1 // loop_header_branch
      %13 = sbr.rel (%p11) target = $region8
    $region5: #{mlp_module_forward.1} parent=1 // loop_body
      %s15 = ssub.s32 %s10, 1
      %s16 = ssub.s32 %s10, 2
      %s17 = sadd.s32 %s10, 1
      %s18 = ssub.s32 %s10, %s17
      %p19 = scmp.eq.s32.totalorder %s18, 0
      %s21 = sadd.s32 %s20, 1
      %s22 = scalar_select %p19, %s20, %s21
      %p25 = pneg %p19
      %p26 = scmp.eq.s32.totalorder %s10, 1
      %p27 = por %p25, %p26
      %p28 = scmp.ne.s32.totalorder %s20, %s23
      %p29 = scmp.eq.s32.totalorder %s10, 0
      %p30 = por %p28, %p29
      %p31 = scmp.ne.s32.totalorder %s20, %s23
      %p32 = scmp.eq.s32.totalorder %s15, 1
      %p33 = por %p31, %p32
      %p34 = scmp.ne.s32.totalorder %s23, %s24
      %p35 = scmp.eq.s32.totalorder %s15, 0
      %p36 = por %p34, %p35
      %p37 = scmp.ne.s32.totalorder %s23, %s24
      %p38 = scmp.eq.s32.totalorder %s16, 1
      %p39 = por %p37, %p38
      %p41 = scmp.ne.s32.totalorder %s24, %s40
      %p42 = scmp.eq.s32.totalorder %s16, 0
      %p43 = por %p41, %p42
      %s45 = sadd.s32 %s44, 1
      %p48 = scmp.eq.s32.totalorder %s10, 1
      %p49 = scmp.ne.s32.totalorder %s44, %s46
      %p50 = scmp.eq.s32.totalorder %s10, 0
      %p51 = por %p49, %p50
      %p52 = scmp.ne.s32.totalorder %s44, %s46
      %p53 = scmp.eq.s32.totalorder %s15, 1
      %p54 = por %p52, %p53
      %p55 = scmp.ne.s32.totalorder %s46, %s47
      %p56 = scmp.eq.s32.totalorder %s15, 0
      %p57 = por %p55, %p56
      %p58 = scmp.ne.s32.totalorder %s46, %s47
      %p59 = scmp.eq.s32.totalorder %s16, 1
      %p60 = por %p58, %p59
      %p62 = scmp.ne.s32.totalorder %s47, %s61
      %p63 = scmp.eq.s32.totalorder %s16, 0
      %p64 = por %p62, %p63
      %s66 = sadd.s32 %s65, 1
      %p69 = scmp.eq.s32.totalorder %s10, 1
      %p70 = scmp.ne.s32.totalorder %s65, %s67
      %p71 = scmp.eq.s32.totalorder %s10, 0
      %p72 = por %p70, %p71
      %p73 = scmp.ne.s32.totalorder %s65, %s67
      %p74 = scmp.eq.s32.totalorder %s15, 1
      %p75 = por %p73, %p74
      %p76 = scmp.ne.s32.totalorder %s67, %s68
      %p77 = scmp.eq.s32.totalorder %s15, 0
      %p78 = por %p76, %p77
      %p79 = scmp.ne.s32.totalorder %s67, %s68
      %p80 = scmp.eq.s32.totalorder %s16, 1
      %p81 = por %p79, %p80
      %p83 = scmp.ne.s32.totalorder %s68, %s82
      %p84 = scmp.eq.s32.totalorder %s16, 0
      %p85 = por %p83, %p84
      %s86 = ssub.s32 %s10, %s17
      %p87 = scmp.eq.s32.totalorder %s86, 0
      %s89 = sadd.s32 %s88, 1
      %s90 = scalar_select %p87, %s88, %s89
      %p93 = pneg %p87
      %p94 = scmp.eq.s32.totalorder %s10, 1
      %p95 = por %p93, %p94
      %p96 = scmp.ne.s32.totalorder %s88, %s91
      %p97 = scmp.eq.s32.totalorder %s10, 0
      %p98 = por %p96, %p97
      %p99 = scmp.ne.s32.totalorder %s88, %s91
      %p100 = scmp.eq.s32.totalorder %s15, 1
      %p101 = por %p99, %p100
      %p102 = scmp.ne.s32.totalorder %s91, %s92
      %p103 = scmp.eq.s32.totalorder %s15, 0
      %p104 = por %p102, %p103
      %p105 = scmp.ne.s32.totalorder %s91, %s92
      %p106 = scmp.eq.s32.totalorder %s16, 1
      %p107 = por %p105, %p106
      %p109 = scmp.ne.s32.totalorder %s92, %s108
      %p110 = scmp.eq.s32.totalorder %s16, 0
      %p111 = por %p109, %p110
      %p112 = scmp.le.s32.totalorder 1, %s10
      %p113 = scmp.lt.s32.totalorder %s10, 3
      %p114 = pnand %p112, %p113
      %p115 = pneg %p114
      // Predicated region
      $region9: #{mlp_module_forward.1} parent=5 // pred_check
        _
      $region10: #{mlp_module_forward.1} parent=5 // pred_check_branch
        %117 = sbr.rel (%p114) target = $region12
      $region11: #{mlp_module_forward.1} parent=5 // pred_region
        %s118 = ssub.s32 %s10, 1
        // Predicated region
        $region13: #{mlp_module_forward.1} parent=11 // pred_check
          %p119 = pneg %p57
        $region14: #{mlp_module_forward.1} parent=11 // pred_check_branch
          %121 = sbr.rel (%p119) target = $region16
        $region15: #{mlp_module_forward.1} parent=11 // pred_region
          %s123 = ssub.s32 23552, 23552
          %124 = vsyncadd [#allocation3], %s123
          %s125 = sshll.u32 [#allocation2], 4
          %s126 = int_to_ptr.vmem [resolvable:$true] %s125
          %131 = dma.hbm_to_vmem [thread:$0]  %s1, 23552, %s126, [#allocation3], 256, 256, 16
        $region16: #{mlp_module_forward.1} parent=11 // pred_fallthru
          _
        // Predicated region
        $region17: #{mlp_module_forward.1} parent=11 // pred_check
          %p132 = pneg %p78
        $region18: #{mlp_module_forward.1} parent=11 // pred_check_branch
          %134 = sbr.rel (%p132) target = $region20
        $region19: #{mlp_module_forward.1} parent=11 // pred_region
          _
        $region20: #{mlp_module_forward.1} parent=11 // pred_fallthru
          _
      $region12: #{mlp_module_forward.1} parent=5 // pred_fallthru
        _
      %p135 = scmp.lt.s32.totalorder %s10, 2
      // Predicated region
      $region21: #{mlp_module_forward.1} parent=5 // pred_check
        %p136 = pneg %p135
      $region22: #{mlp_module_forward.1} parent=5 // pred_check_branch
        %138 = sbr.rel (%p136) target = $region24
      $region23: #{mlp_module_forward.1} parent=5 // pred_region
        // Predicated region
        $region25: #{mlp_module_forward.1} parent=23 // pred_check
          %p139 = pneg %p30
        $region26: #{mlp_module_forward.1} parent=23 // pred_check_branch
          %141 = sbr.rel (%p139) target = $region28
        $region27: #{mlp_module_forward.1} parent=23 // pred_region
          %p142 = scmp.lt.s32.totalorder %s10, 1
          %s143 = scalar_select %p142, %s10, 1
          %s144 = smul.addr %s143, 2
          %s145 = smul.addr %s144, 8
          %s146 = scalar_lea.vmem %s0, %s145
        $region28: #{mlp_module_forward.1} parent=23 // pred_fallthru
          _
      $region24: #{mlp_module_forward.1} parent=5 // pred_fallthru
        _
      %p147 = scmp.le.s32.totalorder 1, %s10
      %p148 = scmp.lt.s32.totalorder %s10, 3
      %p149 = pnand %p147, %p148
      %p150 = pneg %p149
      // Predicated region
      $region29: #{mlp_module_forward.1} parent=5 // pred_check
        _
      $region30: #{mlp_module_forward.1} parent=5 // pred_check_branch
        %152 = sbr.rel (%p149) target = $region32
      $region31: #{mlp_module_forward.1} parent=5 // pred_region
        %s153 = ssub.s32 %s10, 1
        // Predicated region
        $region33: #{mlp_module_forward.1} parent=31 // pred_check
          %p154 = pneg %p57
        $region34: #{mlp_module_forward.1} parent=31 // pred_check_branch
          %156 = sbr.rel (%p154) target = $region36
        $region35: #{mlp_module_forward.1} parent=31 // pred_region
          %157 = dma.done [#allocation3], 23552
        $region36: #{mlp_module_forward.1} parent=31 // pred_fallthru
          _
        %p158 = scmp.lt.s32.totalorder %s15, 1
        %s159 = scalar_select %p158, %s15, 1
        %s160 = smul.addr %s159, 2
        %s161 = smul.addr %s160, 8
        %s162 = scalar_lea.vmem %s0, %s161
        %p163 = pneg %p36
        %p164 = pneg %p33
        %p165 = pneg %p57
        %p166 = pneg %p54
        %p167 = pneg %p78
        %p168 = pneg %p75
        %p169 = pneg %p104
        %p170 = pneg %p101
        %p171 = scmp.lt.s32.totalorder %s15, 1
        %s172 = scalar_select %p171, %s15, 1
        %s173 = smul.addr %s172, 2
        %s174 = smul.addr %s173, 8
        %s175 = scalar_lea.vmem %s3, %s174
        %p176 = scmp.lt.s32.totalorder %s15, 1
        %s177 = scalar_select %p176, %s15, 1
        %s178 = smul.addr %s177, 2
        %s179 = smul.addr %s178, 8
        %s180 = scalar_lea.vmem %s0, %s179
        %p181 = scmp.lt.s32.totalorder %s15, 1
        %s182 = scalar_select %p181, %s15, 1
        %s183 = smul.addr %s182, 2
        %s184 = smul.addr %s183, 8
        %s185 = scalar_lea.vmem %s3, %s184
        %v186 = vld [vmem:[%s180] sm:$0xff]
        %v187 = vld [vmem:[%s180 + $0x8] sm:$0xff]
        %v188 = vld [vmem:[#allocation2] sm:$0xff]
        %v189 = vld [vmem:[#allocation2 + $0x10] sm:$0xff]
        %v190 = vld [vmem:[#allocation2 + $0x20] sm:$0xff]
        %v191 = vld [vmem:[#allocation2 + $0x30] sm:$0xff]
        %v192 = vld [vmem:[#allocation2 + $0x40] sm:$0xff]
        %v193 = vld [vmem:[#allocation2 + $0x50] sm:$0xff]
        %v194 = vld [vmem:[#allocation2 + $0x60] sm:$0xff]
        %v195 = vld [vmem:[#allocation2 + $0x70] sm:$0xff]
        %v196 = vld [vmem:[#allocation2 + $0x80] sm:$0xff]
        %v197 = vld [vmem:[#allocation2 + $0x90] sm:$0xff]
        %v198 = vld [vmem:[#allocation2 + $0xa0] sm:$0xff]
        %v199 = vld [vmem:[#allocation2 + $0xb0] sm:$0xff]
        %v200 = vld [vmem:[#allocation2 + $0xc0] sm:$0xff]
        %v201 = vld [vmem:[#allocation2 + $0xd0] sm:$0xff]
        %v202 = vld [vmem:[#allocation2 + $0xe0] sm:$0xff]
        %v203 = vld [vmem:[#allocation2 + $0xf0] sm:$0xff]
        %v204 = vld [vmem:[#allocation2 + $0x100] sm:$0xff]
        %v205 = vld [vmem:[#allocation2 + $0x110] sm:$0xff]
        %v206 = vld [vmem:[#allocation2 + $0x120] sm:$0xff]
        %v207 = vld [vmem:[#allocation2 + $0x130] sm:$0xff]
        %v208 = vld [vmem:[#allocation2 + $0x140] sm:$0xff]
        %v209 = vld [vmem:[#allocation2 + $0x150] sm:$0xff]
        %v210 = vld [vmem:[#allocation2 + $0x160] sm:$0xff]
        %v211 = vld [vmem:[#allocation2 + $0x170] sm:$0xff]
        %v212 = vld [vmem:[#allocation2 + $0x180] sm:$0xff]
        %v213 = vld [vmem:[#allocation2 + $0x190] sm:$0xff]
        %v214 = vld [vmem:[#allocation2 + $0x1a0] sm:$0xff]
        %v215 = vld [vmem:[#allocation2 + $0x1b0] sm:$0xff]
        %v216 = vld [vmem:[#allocation2 + $0x1c0] sm:$0xff]
        %v217 = vld [vmem:[#allocation2 + $0x1d0] sm:$0xff]
        %v218 = vld [vmem:[#allocation2 + $0x1e0] sm:$0xff]
        %v219 = vld [vmem:[#allocation2 + $0x1f0] sm:$0xff]
        %v220 = vld [vmem:[%s2] ss:$0 sm:$0xff]
        %221 = vmatprep.subr.mxu0 0.0
        %222 = vmatpush1.msra.mxu0 %v188
        %223 = vmatprep.subr.mxu0 0.0
        %224 = vmatpush1.msra.mxu0 %v189
        %225 = vmatprep.subr.mxu0 0.0
        %226 = vmatpush1.msra.mxu0 %v190
        %227 = vmatprep.subr.mxu0 0.0
        %228 = vmatpush1.msra.mxu0 %v191
        %229 = vmatprep.subr.mxu0 0.0
        %230 = vmatpush1.msra.mxu0 %v192
        %231 = vmatprep.subr.mxu0 0.0
        %232 = vmatpush1.msra.mxu0 %v193
        %233 = vmatprep.subr.mxu0 0.0
        %234 = vmatpush1.msra.mxu0 %v194
        %235 = vmatprep.subr.mxu0 0.0
        %236 = vmatpush1.msra.mxu0 %v195
        %237 = vmatprep.subr.mxu0 0.0
        %238 = vmatpush1.msra.mxu0 %v196
        %239 = vmatprep.subr.mxu0 0.0
        %240 = vmatpush1.msra.mxu0 %v197
        %241 = vmatprep.subr.mxu0 0.0
        %242 = vmatpush1.msra.mxu0 %v198
        %243 = vmatprep.subr.mxu0 0.0
        %244 = vmatpush1.msra.mxu0 %v199
        %245 = vmatprep.subr.mxu0 0.0
        %246 = vmatpush1.msra.mxu0 %v200
        %247 = vmatprep.subr.mxu0 0.0
        %248 = vmatpush1.msra.mxu0 %v201
        %249 = vmatprep.subr.mxu0 0.0
        %250 = vmatpush1.msra.mxu0 %v202
        %251 = vmatprep.subr.mxu0 0.0
        %252 = vmatpush1.msra.mxu0 %v203
        %253 = vmatprep.subr.mxu0 0.0
        %254 = vmatpush1.msra.mxu0 %v204
        %255 = vmatprep.subr.mxu0 0.0
        %256 = vmatpush1.msra.mxu0 %v205
        %257 = vmatprep.subr.mxu0 0.0
        %258 = vmatpush1.msra.mxu0 %v206
        %259 = vmatprep.subr.mxu0 0.0
        %260 = vmatpush1.msra.mxu0 %v207
        %261 = vmatprep.subr.mxu0 0.0
        %262 = vmatpush1.msra.mxu0 %v208
        %263 = vmatprep.subr.mxu0 0.0
        %264 = vmatpush1.msra.mxu0 %v209
        %265 = vmatprep.subr.mxu0 0.0
        %266 = vmatpush1.msra.mxu0 %v210
        %267 = vmatprep.subr.mxu0 0.0
        %268 = vmatpush1.msra.mxu0 %v211
        %269 = vmatprep.subr.mxu0 0.0
        %270 = vmatpush1.msra.mxu0 %v212
        %271 = vmatprep.subr.mxu0 0.0
        %272 = vmatpush1.msra.mxu0 %v213
        %273 = vmatprep.subr.mxu0 0.0
        %274 = vmatpush1.msra.mxu0 %v214
        %275 = vmatprep.subr.mxu0 0.0
        %276 = vmatpush1.msra.mxu0 %v215
        %277 = vmatprep.subr.mxu0 0.0
        %278 = vmatpush1.msra.mxu0 %v216
        %279 = vmatprep.subr.mxu0 0.0
        %280 = vmatpush1.msra.mxu0 %v217
        %281 = vmatprep.subr.mxu0 0.0
        %282 = vmatpush1.msra.mxu0 %v218
        %283 = vmatprep.subr.mxu0 0.0
        %284 = vmatpush1.msra.mxu0 %v219
        %285 = vmatprep.mubr.f32.mxu0 %v187
        %286 = vmatmul.mubr.f32.gmra.mrb[0].mxu0 %v186
        %v287 = vpop.f32.mrb[0].mxu0
        %v288 = vadd.f32 %v220, %v287
        %v289 = vpop.f32.mrb[0].mxu0
        %290 = vdwg.mxu0
        %v291 = vtanh.pop %v288
        %v292 = vld [vmem:[#allocation2 + $0x200] sm:$0xff]
        %v293 = vld [vmem:[#allocation2 + $0x210] sm:$0xff]
        %v294 = vld [vmem:[#allocation2 + $0x220] sm:$0xff]
        %v295 = vld [vmem:[#allocation2 + $0x230] sm:$0xff]
        %v296 = vld [vmem:[#allocation2 + $0x240] sm:$0xff]
        %v297 = vld [vmem:[#allocation2 + $0x250] sm:$0xff]
        %v298 = vld [vmem:[#allocation2 + $0x260] sm:$0xff]
        %v299 = vld [vmem:[#allocation2 + $0x270] sm:$0xff]
        %v300 = vld [vmem:[#allocation2 + $0x280] sm:$0xff]
        %v301 = vld [vmem:[#allocation2 + $0x290] sm:$0xff]
        %v302 = vld [vmem:[#allocation2 + $0x2a0] sm:$0xff]
        %v303 = vld [vmem:[#allocation2 + $0x2b0] sm:$0xff]
        %v304 = vld [vmem:[#allocation2 + $0x2c0] sm:$0xff]
        %v305 = vld [vmem:[#allocation2 + $0x2d0] sm:$0xff]
        %v306 = vld [vmem:[#allocation2 + $0x2e0] sm:$0xff]
        %v307 = vld [vmem:[#allocation2 + $0x2f0] sm:$0xff]
        %v308 = vld [vmem:[%s2 + $0x1] ss:$0 sm:$0xff]
        %309 = vmatprep.subr.mxu0 0.0
        %310 = vmatpush1.msra.mxu0 %v292
        %311 = vmatprep.subr.mxu0 0.0
        %312 = vmatpush1.msra.mxu0 %v293
        %313 = vmatprep.subr.mxu0 0.0
        %314 = vmatpush1.msra.mxu0 %v294
        %315 = vmatprep.subr.mxu0 0.0
        %316 = vmatpush1.msra.mxu0 %v295
        %317 = vmatprep.subr.mxu0 0.0
        %318 = vmatpush1.msra.mxu0 %v296
        %319 = vmatprep.subr.mxu0 0.0
        %320 = vmatpush1.msra.mxu0 %v297
        %321 = vmatprep.subr.mxu0 0.0
        %322 = vmatpush1.msra.mxu0 %v298
        %323 = vmatprep.subr.mxu0 0.0
        %324 = vmatpush1.msra.mxu0 %v299
        %325 = vmatprep.subr.mxu0 0.0
        %326 = vmatpush1.msra.mxu0 %v300
        %327 = vmatprep.subr.mxu0 0.0
        %328 = vmatpush1.msra.mxu0 %v301
        %329 = vmatprep.subr.mxu0 0.0
        %330 = vmatpush1.msra.mxu0 %v302
        %331 = vmatprep.subr.mxu0 0.0
        %332 = vmatpush1.msra.mxu0 %v303
        %333 = vmatprep.subr.mxu0 0.0
        %334 = vmatpush1.msra.mxu0 %v304
        %335 = vmatprep.subr.mxu0 0.0
        %336 = vmatpush1.msra.mxu0 %v305
        %337 = vmatprep.subr.mxu0 0.0
        %338 = vmatpush1.msra.mxu0 %v306
        %339 = vmatprep.subr.mxu0 0.0
        %340 = vmatpush1.msra.mxu0 %v307
        %341 = vmatprep.subr.mxu0 0.0
        %342 = vmatpush1.msra.mxu0 0.0
        %343 = vmatprep.subr.mxu0 0.0
        %344 = vmatpush1.msra.mxu0 0.0
        %345 = vmatprep.subr.mxu0 0.0
        %346 = vmatpush1.msra.mxu0 0.0
        %347 = vmatprep.subr.mxu0 0.0
        %348 = vmatpush1.msra.mxu0 0.0
        %349 = vmatprep.subr.mxu0 0.0
        %350 = vmatpush1.msra.mxu0 0.0
        %351 = vmatprep.subr.mxu0 0.0
        %352 = vmatpush1.msra.mxu0 0.0
        %353 = vmatprep.subr.mxu0 0.0
        %354 = vmatpush1.msra.mxu0 0.0
        %355 = vmatprep.subr.mxu0 0.0
        %356 = vmatpush1.msra.mxu0 0.0
        %357 = vmatprep.subr.mxu0 0.0
        %358 = vmatpush1.msra.mxu0 0.0
        %359 = vmatprep.subr.mxu0 0.0
        %360 = vmatpush1.msra.mxu0 0.0
        %361 = vmatprep.subr.mxu0 0.0
        %362 = vmatpush1.msra.mxu0 0.0
        %363 = vmatprep.subr.mxu0 0.0
        %364 = vmatpush1.msra.mxu0 0.0
        %365 = vmatprep.subr.mxu0 0.0
        %366 = vmatpush1.msra.mxu0 0.0
        %367 = vmatprep.subr.mxu0 0.0
        %368 = vmatpush1.msra.mxu0 0.0
        %369 = vmatprep.subr.mxu0 0.0
        %370 = vmatpush1.msra.mxu0 0.0
        %371 = vmatprep.subr.mxu0 0.0
        %372 = vmatpush1.msra.mxu0 0.0
        %373 = vmatprep.mubr.f32.mxu0 0.0
        %374 = vmatmul.mubr.f32.gmra.mrb[0].mxu0 %v291
        %v375 = vpop.f32.mrb[0].mxu0
        %v376 = vadd.f32 %v308, %v375
        %v377 = vpop.f32.mrb[0].mxu0
        %378 = vdwg.mxu0
        %v379 = vtanh.pop %v376
        %v380 = vld [vmem:[#allocation2 + $0x300] sm:$0xff]
        %v381 = vld [vmem:[#allocation2 + $0x310] sm:$0xff]
        %v382 = vld [vmem:[#allocation2 + $0x320] sm:$0xff]
        %v383 = vld [vmem:[#allocation2 + $0x330] sm:$0xff]
        %v384 = vld [vmem:[#allocation2 + $0x340] sm:$0xff]
        %v385 = vld [vmem:[#allocation2 + $0x350] sm:$0xff]
        %v386 = vld [vmem:[#allocation2 + $0x360] sm:$0xff]
        %v387 = vld [vmem:[#allocation2 + $0x370] sm:$0xff]
        %v388 = vld [vmem:[%s2 + $0x2] ss:$0 sm:$0xff]
        %vm389 = vcmask 523264
        %v391 = vsel %vm389, %v379, 0
        %393 = vmatprep.subr.mxu0 0.0
        %394 = vmatpush1.msra.mxu0 %v380
        %395 = vmatprep.subr.mxu0 0.0
        %396 = vmatpush1.msra.mxu0 %v381
        %397 = vmatprep.subr.mxu0 0.0
        %398 = vmatpush1.msra.mxu0 %v382
        %399 = vmatprep.subr.mxu0 0.0
        %400 = vmatpush1.msra.mxu0 %v383
        %401 = vmatprep.subr.mxu0 0.0
        %402 = vmatpush1.msra.mxu0 %v384
        %403 = vmatprep.subr.mxu0 0.0
        %404 = vmatpush1.msra.mxu0 %v385
        %405 = vmatprep.subr.mxu0 0.0
        %406 = vmatpush1.msra.mxu0 %v386
        %407 = vmatprep.subr.mxu0 0.0
        %408 = vmatpush1.msra.mxu0 %v387
        %409 = vmatprep.subr.mxu0 0.0
        %410 = vmatpush1.msra.mxu0 0.0
        %411 = vmatprep.subr.mxu0 0.0
        %412 = vmatpush1.msra.mxu0 0.0
        %413 = vmatprep.subr.mxu0 0.0
        %414 = vmatpush1.msra.mxu0 0.0
        %415 = vmatprep.subr.mxu0 0.0
        %416 = vmatpush1.msra.mxu0 0.0
        %417 = vmatprep.subr.mxu0 0.0
        %418 = vmatpush1.msra.mxu0 0.0
        %419 = vmatprep.subr.mxu0 0.0
        %420 = vmatpush1.msra.mxu0 0.0
        %421 = vmatprep.subr.mxu0 0.0
        %422 = vmatpush1.msra.mxu0 0.0
        %423 = vmatprep.subr.mxu0 0.0
        %424 = vmatpush1.msra.mxu0 0.0
        %425 = vmatprep.subr.mxu0 0.0
        %426 = vmatpush1.msra.mxu0 0.0
        %427 = vmatprep.subr.mxu0 0.0
        %428 = vmatpush1.msra.mxu0 0.0
        %429 = vmatprep.subr.mxu0 0.0
        %430 = vmatpush1.msra.mxu0 0.0
        %431 = vmatprep.subr.mxu0 0.0
        %432 = vmatpush1.msra.mxu0 0.0
        %433 = vmatprep.subr.mxu0 0.0
        %434 = vmatpush1.msra.mxu0 0.0
        %435 = vmatprep.subr.mxu0 0.0
        %436 = vmatpush1.msra.mxu0 0.0
        %437 = vmatprep.subr.mxu0 0.0
        %438 = vmatpush1.msra.mxu0 0.0
        %439 = vmatprep.subr.mxu0 0.0
        %440 = vmatpush1.msra.mxu0 0.0
        %441 = vmatprep.subr.mxu0 0.0
        %442 = vmatpush1.msra.mxu0 0.0
        %443 = vmatprep.subr.mxu0 0.0
        %444 = vmatpush1.msra.mxu0 0.0
        %445 = vmatprep.subr.mxu0 0.0
        %446 = vmatpush1.msra.mxu0 0.0
        %447 = vmatprep.subr.mxu0 0.0
        %448 = vmatpush1.msra.mxu0 0.0
        %449 = vmatprep.subr.mxu0 0.0
        %450 = vmatpush1.msra.mxu0 0.0
        %451 = vmatprep.subr.mxu0 0.0
        %452 = vmatpush1.msra.mxu0 0.0
        %453 = vmatprep.subr.mxu0 0.0
        %454 = vmatpush1.msra.mxu0 0.0
        %455 = vmatprep.subr.mxu0 0.0
        %456 = vmatpush1.msra.mxu0 0.0
        %457 = vmatprep.mubr.f32.mxu0 0.0
        %458 = vmatmul.mubr.f32.gmra.mrb[0].mxu0 %v391
        %v459 = vpop.f32.mrb[0].mxu0
        %v460 = vadd.f32 %v388, %v459
        %v461 = vpop.f32.mrb[0].mxu0
        %462 = vdwg.mxu0
        %v463 = vtanh.pop %v460
        %v464 = vld [vmem:[#allocation2 + $0x380] sm:$0xff]
        %v465 = vld [vmem:[#allocation2 + $0x390] sm:$0xff]
        %v466 = vld [vmem:[#allocation2 + $0x3a0] sm:$0xff]
        %v467 = vld [vmem:[#allocation2 + $0x3b0] sm:$0xff]
        %v468 = vld [vmem:[%s2 + $0x3] ss:$0 sm:$0xff]
        %vm469 = vcmask 261120
        %v471 = vsel %vm469, %v463, 0
        %473 = vmatprep.subr.mxu0 0.0
        %474 = vmatpush1.msra.mxu0 %v464
        %475 = vmatprep.subr.mxu0 0.0
        %476 = vmatpush1.msra.mxu0 %v465
        %477 = vmatprep.subr.mxu0 0.0
        %478 = vmatpush1.msra.mxu0 %v466
        %479 = vmatprep.subr.mxu0 0.0
        %480 = vmatpush1.msra.mxu0 %v467
        %481 = vmatprep.subr.mxu0 0.0
        %482 = vmatpush1.msra.mxu0 0.0
        %483 = vmatprep.subr.mxu0 0.0
        %484 = vmatpush1.msra.mxu0 0.0
        %485 = vmatprep.subr.mxu0 0.0
        %486 = vmatpush1.msra.mxu0 0.0
        %487 = vmatprep.subr.mxu0 0.0
        %488 = vmatpush1.msra.mxu0 0.0
        %489 = vmatprep.subr.mxu0 0.0
        %490 = vmatpush1.msra.mxu0 0.0
        %491 = vmatprep.subr.mxu0 0.0
        %492 = vmatpush1.msra.mxu0 0.0
        %493 = vmatprep.subr.mxu0 0.0
        %494 = vmatpush1.msra.mxu0 0.0
        %495 = vmatprep.subr.mxu0 0.0
        %496 = vmatpush1.msra.mxu0 0.0
        %497 = vmatprep.subr.mxu0 0.0
        %498 = vmatpush1.msra.mxu0 0.0
        %499 = vmatprep.subr.mxu0 0.0
        %500 = vmatpush1.msra.mxu0 0.0
        %501 = vmatprep.subr.mxu0 0.0
        %502 = vmatpush1.msra.mxu0 0.0
        %503 = vmatprep.subr.mxu0 0.0
        %504 = vmatpush1.msra.mxu0 0.0
        %505 = vmatprep.subr.mxu0 0.0
        %506 = vmatpush1.msra.mxu0 0.0
        %507 = vmatprep.subr.mxu0 0.0
        %508 = vmatpush1.msra.mxu0 0.0
        %509 = vmatprep.subr.mxu0 0.0
        %510 = vmatpush1.msra.mxu0 0.0
        %511 = vmatprep.subr.mxu0 0.0
        %512 = vmatpush1.msra.mxu0 0.0
        %513 = vmatprep.subr.mxu0 0.0
        %514 = vmatpush1.msra.mxu0 0.0
        %515 = vmatprep.subr.mxu0 0.0
        %516 = vmatpush1.msra.mxu0 0.0
        %517 = vmatprep.subr.mxu0 0.0
        %518 = vmatpush1.msra.mxu0 0.0
        %519 = vmatprep.subr.mxu0 0.0
        %520 = vmatpush1.msra.mxu0 0.0
        %521 = vmatprep.subr.mxu0 0.0
        %522 = vmatpush1.msra.mxu0 0.0
        %523 = vmatprep.subr.mxu0 0.0
        %524 = vmatpush1.msra.mxu0 0.0
        %525 = vmatprep.subr.mxu0 0.0
        %526 = vmatpush1.msra.mxu0 0.0
        %527 = vmatprep.subr.mxu0 0.0
        %528 = vmatpush1.msra.mxu0 0.0
        %529 = vmatprep.subr.mxu0 0.0
        %530 = vmatpush1.msra.mxu0 0.0
        %531 = vmatprep.subr.mxu0 0.0
        %532 = vmatpush1.msra.mxu0 0.0
        %533 = vmatprep.subr.mxu0 0.0
        %534 = vmatpush1.msra.mxu0 0.0
        %535 = vmatprep.subr.mxu0 0.0
        %536 = vmatpush1.msra.mxu0 0.0
        %537 = vmatprep.mubr.f32.mxu0 0.0
        %538 = vmatmul.mubr.f32.gmra.mrb[0].mxu0 %v471
        %v539 = vpop.f32.mrb[0].mxu0
        %v540 = vadd.f32 %v468, %v539
        %v541 = vpop.f32.mrb[0].mxu0
        %542 = vdwg.mxu0
        %v543 = vtanh.pop %v540
        %v544 = vld [vmem:[#allocation2 + $0x3c0] sm:$0xff]
        %v545 = vld [vmem:[#allocation2 + $0x3d0] sm:$0xff]
        %v546 = vld [vmem:[%s2 + $0x4] ss:$0 sm:$0xff]
        %vm547 = vcmask 130048
        %v549 = vsel %vm547, %v543, 0
        %551 = vmatprep.subr.mxu0 0.0
        %552 = vmatpush1.msra.mxu0 %v544
        %553 = vmatprep.subr.mxu0 0.0
        %554 = vmatpush1.msra.mxu0 %v545
        %555 = vmatprep.subr.mxu0 0.0
        %556 = vmatpush1.msra.mxu0 0.0
        %557 = vmatprep.subr.mxu0 0.0
        %558 = vmatpush1.msra.mxu0 0.0
        %559 = vmatprep.subr.mxu0 0.0
        %560 = vmatpush1.msra.mxu0 0.0
        %561 = vmatprep.subr.mxu0 0.0
        %562 = vmatpush1.msra.mxu0 0.0
        %563 = vmatprep.subr.mxu0 0.0
        %564 = vmatpush1.msra.mxu0 0.0
        %565 = vmatprep.subr.mxu0 0.0
        %566 = vmatpush1.msra.mxu0 0.0
        %567 = vmatprep.subr.mxu0 0.0
        %568 = vmatpush1.msra.mxu0 0.0
        %569 = vmatprep.subr.mxu0 0.0
        %570 = vmatpush1.msra.mxu0 0.0
        %571 = vmatprep.subr.mxu0 0.0
        %572 = vmatpush1.msra.mxu0 0.0
        %573 = vmatprep.subr.mxu0 0.0
        %574 = vmatpush1.msra.mxu0 0.0
        %575 = vmatprep.subr.mxu0 0.0
        %576 = vmatpush1.msra.mxu0 0.0
        %577 = vmatprep.subr.mxu0 0.0
        %578 = vmatpush1.msra.mxu0 0.0
        %579 = vmatprep.subr.mxu0 0.0
        %580 = vmatpush1.msra.mxu0 0.0
        %581 = vmatprep.subr.mxu0 0.0
        %582 = vmatpush1.msra.mxu0 0.0
        %583 = vmatprep.subr.mxu0 0.0
        %584 = vmatpush1.msra.mxu0 0.0
        %585 = vmatprep.subr.mxu0 0.0
        %586 = vmatpush1.msra.mxu0 0.0
        %587 = vmatprep.subr.mxu0 0.0
        %588 = vmatpush1.msra.mxu0 0.0
        %589 = vmatprep.subr.mxu0 0.0
        %590 = vmatpush1.msra.mxu0 0.0
        %591 = vmatprep.subr.mxu0 0.0
        %592 = vmatpush1.msra.mxu0 0.0
        %593 = vmatprep.subr.mxu0 0.0
        %594 = vmatpush1.msra.mxu0 0.0
        %595 = vmatprep.subr.mxu0 0.0
        %596 = vmatpush1.msra.mxu0 0.0
        %597 = vmatprep.subr.mxu0 0.0
        %598 = vmatpush1.msra.mxu0 0.0
        %599 = vmatprep.subr.mxu0 0.0
        %600 = vmatpush1.msra.mxu0 0.0
        %601 = vmatprep.subr.mxu0 0.0
        %602 = vmatpush1.msra.mxu0 0.0
        %603 = vmatprep.subr.mxu0 0.0
        %604 = vmatpush1.msra.mxu0 0.0
        %605 = vmatprep.subr.mxu0 0.0
        %606 = vmatpush1.msra.mxu0 0.0
        %607 = vmatprep.subr.mxu0 0.0
        %608 = vmatpush1.msra.mxu0 0.0
        %609 = vmatprep.subr.mxu0 0.0
        %610 = vmatpush1.msra.mxu0 0.0
        %611 = vmatprep.subr.mxu0 0.0
        %612 = vmatpush1.msra.mxu0 0.0
        %613 = vmatprep.subr.mxu0 0.0
        %614 = vmatpush1.msra.mxu0 0.0
        %615 = vmatprep.mubr.f32.mxu0 0.0
        %616 = vmatmul.mubr.f32.gmra.mrb[0].mxu0 %v549
        %v617 = vpop.f32.mrb[0].mxu0
        %v618 = vadd.f32 %v546, %v617
        %v619 = vpop.f32.mrb[0].mxu0
        %620 = vdwg.mxu0
        %v621 = vtanh.pop %v618
        %v622 = vld [vmem:[#allocation2 + $0x3e0] sm:$0xff]
        %v623 = vld [vmem:[#allocation2 + $0x3f0] sm:$0xff]
        %v624 = vld [vmem:[%s2 + $0x5] ss:$0 sm:$0xff]
        %v626 = vsel %vm547, %v621, 0
        %628 = vmatprep.subr.mxu0 0.0
        %629 = vmatpush1.msra.mxu0 %v622
        %630 = vmatprep.subr.mxu0 0.0
        %631 = vmatpush1.msra.mxu0 %v623
        %632 = vmatprep.subr.mxu0 0.0
        %633 = vmatpush1.msra.mxu0 0.0
        %634 = vmatprep.subr.mxu0 0.0
        %635 = vmatpush1.msra.mxu0 0.0
        %636 = vmatprep.subr.mxu0 0.0
        %637 = vmatpush1.msra.mxu0 0.0
        %638 = vmatprep.subr.mxu0 0.0
        %639 = vmatpush1.msra.mxu0 0.0
        %640 = vmatprep.subr.mxu0 0.0
        %641 = vmatpush1.msra.mxu0 0.0
        %642 = vmatprep.subr.mxu0 0.0
        %643 = vmatpush1.msra.mxu0 0.0
        %644 = vmatprep.subr.mxu0 0.0
        %645 = vmatpush1.msra.mxu0 0.0
        %646 = vmatprep.subr.mxu0 0.0
        %647 = vmatpush1.msra.mxu0 0.0
        %648 = vmatprep.subr.mxu0 0.0
        %649 = vmatpush1.msra.mxu0 0.0
        %650 = vmatprep.subr.mxu0 0.0
        %651 = vmatpush1.msra.mxu0 0.0
        %652 = vmatprep.subr.mxu0 0.0
        %653 = vmatpush1.msra.mxu0 0.0
        %654 = vmatprep.subr.mxu0 0.0
        %655 = vmatpush1.msra.mxu0 0.0
        %656 = vmatprep.subr.mxu0 0.0
        %657 = vmatpush1.msra.mxu0 0.0
        %658 = vmatprep.subr.mxu0 0.0
        %659 = vmatpush1.msra.mxu0 0.0
        %660 = vmatprep.subr.mxu0 0.0
        %661 = vmatpush1.msra.mxu0 0.0
        %662 = vmatprep.subr.mxu0 0.0
        %663 = vmatpush1.msra.mxu0 0.0
        %664 = vmatprep.subr.mxu0 0.0
        %665 = vmatpush1.msra.mxu0 0.0
        %666 = vmatprep.subr.mxu0 0.0
        %667 = vmatpush1.msra.mxu0 0.0
        %668 = vmatprep.subr.mxu0 0.0
        %669 = vmatpush1.msra.mxu0 0.0
        %670 = vmatprep.subr.mxu0 0.0
        %671 = vmatpush1.msra.mxu0 0.0
        %672 = vmatprep.subr.mxu0 0.0
        %673 = vmatpush1.msra.mxu0 0.0
        %674 = vmatprep.subr.mxu0 0.0
        %675 = vmatpush1.msra.mxu0 0.0
        %676 = vmatprep.subr.mxu0 0.0
        %677 = vmatpush1.msra.mxu0 0.0
        %678 = vmatprep.subr.mxu0 0.0
        %679 = vmatpush1.msra.mxu0 0.0
        %680 = vmatprep.subr.mxu0 0.0
        %681 = vmatpush1.msra.mxu0 0.0
        %682 = vmatprep.subr.mxu0 0.0
        %683 = vmatpush1.msra.mxu0 0.0
        %684 = vmatprep.subr.mxu0 0.0
        %685 = vmatpush1.msra.mxu0 0.0
        %686 = vmatprep.subr.mxu0 0.0
        %687 = vmatpush1.msra.mxu0 0.0
        %688 = vmatprep.subr.mxu0 0.0
        %689 = vmatpush1.msra.mxu0 0.0
        %690 = vmatprep.subr.mxu0 0.0
        %691 = vmatpush1.msra.mxu0 0.0
        %692 = vmatprep.mubr.f32.mxu0 0.0
        %693 = vmatmul.mubr.f32.gmra.mrb[0].mxu0 %v626
        %v694 = vpop.f32.mrb[0].mxu0
        %v695 = vadd.f32 %v624, %v694
        %v696 = vpop.f32.mrb[0].mxu0
        %697 = vdwg.mxu0
        %v698 = vtanh.pop %v695
        %v699 = vld [vmem:[#allocation2 + $0x400] sm:$0xff]
        %v700 = vld [vmem:[#allocation2 + $0x410] sm:$0xff]
        %v701 = vld [vmem:[#allocation2 + $0x420] sm:$0xff]
        %v702 = vld [vmem:[#allocation2 + $0x430] sm:$0xff]
        %v703 = vld [vmem:[%s2 + $0x6] ss:$0 sm:$0xff]
        %v705 = vsel %vm469, %v698, 0
        %707 = vmatprep.subr.mxu0 0.0
        %708 = vmatpush1.msra.mxu0 %v699
        %709 = vmatprep.subr.mxu0 0.0
        %710 = vmatpush1.msra.mxu0 %v700
        %711 = vmatprep.subr.mxu0 0.0
        %712 = vmatpush1.msra.mxu0 %v701
        %713 = vmatprep.subr.mxu0 0.0
        %714 = vmatpush1.msra.mxu0 %v702
        %715 = vmatprep.subr.mxu0 0.0
        %716 = vmatpush1.msra.mxu0 0.0
        %717 = vmatprep.subr.mxu0 0.0
        %718 = vmatpush1.msra.mxu0 0.0
        %719 = vmatprep.subr.mxu0 0.0
        %720 = vmatpush1.msra.mxu0 0.0
        %721 = vmatprep.subr.mxu0 0.0
        %722 = vmatpush1.msra.mxu0 0.0
        %723 = vmatprep.subr.mxu0 0.0
        %724 = vmatpush1.msra.mxu0 0.0
        %725 = vmatprep.subr.mxu0 0.0
        %726 = vmatpush1.msra.mxu0 0.0
        %727 = vmatprep.subr.mxu0 0.0
        %728 = vmatpush1.msra.mxu0 0.0
        %729 = vmatprep.subr.mxu0 0.0
        %730 = vmatpush1.msra.mxu0 0.0
        %731 = vmatprep.subr.mxu0 0.0
        %732 = vmatpush1.msra.mxu0 0.0
        %733 = vmatprep.subr.mxu0 0.0
        %734 = vmatpush1.msra.mxu0 0.0
        %735 = vmatprep.subr.mxu0 0.0
        %736 = vmatpush1.msra.mxu0 0.0
        %737 = vmatprep.subr.mxu0 0.0
        %738 = vmatpush1.msra.mxu0 0.0
        %739 = vmatprep.subr.mxu0 0.0
        %740 = vmatpush1.msra.mxu0 0.0
        %741 = vmatprep.subr.mxu0 0.0
        %742 = vmatpush1.msra.mxu0 0.0
        %743 = vmatprep.subr.mxu0 0.0
        %744 = vmatpush1.msra.mxu0 0.0
        %745 = vmatprep.subr.mxu0 0.0
        %746 = vmatpush1.msra.mxu0 0.0
        %747 = vmatprep.subr.mxu0 0.0
        %748 = vmatpush1.msra.mxu0 0.0
        %749 = vmatprep.subr.mxu0 0.0
        %750 = vmatpush1.msra.mxu0 0.0
        %751 = vmatprep.subr.mxu0 0.0
        %752 = vmatpush1.msra.mxu0 0.0
        %753 = vmatprep.subr.mxu0 0.0
        %754 = vmatpush1.msra.mxu0 0.0
        %755 = vmatprep.subr.mxu0 0.0
        %756 = vmatpush1.msra.mxu0 0.0
        %757 = vmatprep.subr.mxu0 0.0
        %758 = vmatpush1.msra.mxu0 0.0
        %759 = vmatprep.subr.mxu0 0.0
        %760 = vmatpush1.msra.mxu0 0.0
        %761 = vmatprep.subr.mxu0 0.0
        %762 = vmatpush1.msra.mxu0 0.0
        %763 = vmatprep.subr.mxu0 0.0
        %764 = vmatpush1.msra.mxu0 0.0
        %765 = vmatprep.subr.mxu0 0.0
        %766 = vmatpush1.msra.mxu0 0.0
        %767 = vmatprep.subr.mxu0 0.0
        %768 = vmatpush1.msra.mxu0 0.0
        %769 = vmatprep.subr.mxu0 0.0
        %770 = vmatpush1.msra.mxu0 0.0
        %771 = vmatprep.mubr.f32.mxu0 0.0
        %772 = vmatmul.mubr.f32.gmra.mrb[0].mxu0 %v705
        %v773 = vpop.f32.mrb[0].mxu0
        %v774 = vadd.f32 %v703, %v773
        %v775 = vpop.f32.mrb[0].mxu0
        %776 = vdwg.mxu0
        %v777 = vtanh.pop %v774
        %v778 = vld [vmem:[#allocation2 + $0x440] sm:$0xff]
        %v779 = vld [vmem:[#allocation2 + $0x450] sm:$0xff]
        %v780 = vld [vmem:[#allocation2 + $0x460] sm:$0xff]
        %v781 = vld [vmem:[#allocation2 + $0x470] sm:$0xff]
        %v782 = vld [vmem:[#allocation2 + $0x480] sm:$0xff]
        %v783 = vld [vmem:[#allocation2 + $0x490] sm:$0xff]
        %v784 = vld [vmem:[#allocation2 + $0x4a0] sm:$0xff]
        %v785 = vld [vmem:[#allocation2 + $0x4b0] sm:$0xff]
        %v786 = vld [vmem:[%s2 + $0x7] ss:$0 sm:$0xff]
        %v788 = vsel %vm389, %v777, 0
        %790 = vmatprep.subr.mxu0 0.0
        %791 = vmatpush1.msra.mxu0 %v778
        %792 = vmatprep.subr.mxu0 0.0
        %793 = vmatpush1.msra.mxu0 %v779
        %794 = vmatprep.subr.mxu0 0.0
        %795 = vmatpush1.msra.mxu0 %v780
        %796 = vmatprep.subr.mxu0 0.0
        %797 = vmatpush1.msra.mxu0 %v781
        %798 = vmatprep.subr.mxu0 0.0
        %799 = vmatpush1.msra.mxu0 %v782
        %800 = vmatprep.subr.mxu0 0.0
        %801 = vmatpush1.msra.mxu0 %v783
        %802 = vmatprep.subr.mxu0 0.0
        %803 = vmatpush1.msra.mxu0 %v784
        %804 = vmatprep.subr.mxu0 0.0
        %805 = vmatpush1.msra.mxu0 %v785
        %806 = vmatprep.subr.mxu0 0.0
        %807 = vmatpush1.msra.mxu0 0.0
        %808 = vmatprep.subr.mxu0 0.0
        %809 = vmatpush1.msra.mxu0 0.0
        %810 = vmatprep.subr.mxu0 0.0
        %811 = vmatpush1.msra.mxu0 0.0
        %812 = vmatprep.subr.mxu0 0.0
        %813 = vmatpush1.msra.mxu0 0.0
        %814 = vmatprep.subr.mxu0 0.0
        %815 = vmatpush1.msra.mxu0 0.0
        %816 = vmatprep.subr.mxu0 0.0
        %817 = vmatpush1.msra.mxu0 0.0
        %818 = vmatprep.subr.mxu0 0.0
        %819 = vmatpush1.msra.mxu0 0.0
        %820 = vmatprep.subr.mxu0 0.0
        %821 = vmatpush1.msra.mxu0 0.0
        %822 = vmatprep.subr.mxu0 0.0
        %823 = vmatpush1.msra.mxu0 0.0
        %824 = vmatprep.subr.mxu0 0.0
        %825 = vmatpush1.msra.mxu0 0.0
        %826 = vmatprep.subr.mxu0 0.0
        %827 = vmatpush1.msra.mxu0 0.0
        %828 = vmatprep.subr.mxu0 0.0
        %829 = vmatpush1.msra.mxu0 0.0
        %830 = vmatprep.subr.mxu0 0.0
        %831 = vmatpush1.msra.mxu0 0.0
        %832 = vmatprep.subr.mxu0 0.0
        %833 = vmatpush1.msra.mxu0 0.0
        %834 = vmatprep.subr.mxu0 0.0
        %835 = vmatpush1.msra.mxu0 0.0
        %836 = vmatprep.subr.mxu0 0.0
        %837 = vmatpush1.msra.mxu0 0.0
        %838 = vmatprep.subr.mxu0 0.0
        %839 = vmatpush1.msra.mxu0 0.0
        %840 = vmatprep.subr.mxu0 0.0
        %841 = vmatpush1.msra.mxu0 0.0
        %842 = vmatprep.subr.mxu0 0.0
        %843 = vmatpush1.msra.mxu0 0.0
        %844 = vmatprep.subr.mxu0 0.0
        %845 = vmatpush1.msra.mxu0 0.0
        %846 = vmatprep.subr.mxu0 0.0
        %847 = vmatpush1.msra.mxu0 0.0
        %848 = vmatprep.subr.mxu0 0.0
        %849 = vmatpush1.msra.mxu0 0.0
        %850 = vmatprep.subr.mxu0 0.0
        %851 = vmatpush1.msra.mxu0 0.0
        %852 = vmatprep.subr.mxu0 0.0
        %853 = vmatpush1.msra.mxu0 0.0
        %854 = vmatprep.mubr.f32.mxu0 0.0
        %855 = vmatmul.mubr.f32.gmra.mrb[0].mxu0 %v788
        %v856 = vpop.f32.mrb[0].mxu0
        %v857 = vadd.f32 %v786, %v856
        %v858 = vpop.f32.mrb[0].mxu0
        %859 = vdwg.mxu0
        %v860 = vtanh.pop %v857
        %v861 = vld [vmem:[#allocation2 + $0x4c0] sm:$0xff]
        %v862 = vld [vmem:[#allocation2 + $0x4c8] sm:$0xff]
        %v863 = vld [vmem:[#allocation2 + $0x4d0] sm:$0xff]
        %v864 = vld [vmem:[#allocation2 + $0x4d8] sm:$0xff]
        %v865 = vld [vmem:[#allocation2 + $0x4e0] sm:$0xff]
        %v866 = vld [vmem:[#allocation2 + $0x4e8] sm:$0xff]
        %v867 = vld [vmem:[#allocation2 + $0x4f0] sm:$0xff]
        %v868 = vld [vmem:[#allocation2 + $0x4f8] sm:$0xff]
        %v869 = vld [vmem:[#allocation2 + $0x500] sm:$0xff]
        %v870 = vld [vmem:[#allocation2 + $0x508] sm:$0xff]
        %v871 = vld [vmem:[#allocation2 + $0x510] sm:$0xff]
        %v872 = vld [vmem:[#allocation2 + $0x518] sm:$0xff]
        %v873 = vld [vmem:[#allocation2 + $0x520] sm:$0xff]
        %v874 = vld [vmem:[#allocation2 + $0x528] sm:$0xff]
        %v875 = vld [vmem:[#allocation2 + $0x530] sm:$0xff]
        %v876 = vld [vmem:[#allocation2 + $0x538] sm:$0xff]
        %v877 = vld [vmem:[#allocation2 + $0x540] sm:$0xff]
        %v878 = vld [vmem:[#allocation2 + $0x548] sm:$0xff]
        %v879 = vld [vmem:[#allocation2 + $0x550] sm:$0xff]
        %v880 = vld [vmem:[#allocation2 + $0x558] sm:$0xff]
        %v881 = vld [vmem:[#allocation2 + $0x560] sm:$0xff]
        %v882 = vld [vmem:[#allocation2 + $0x568] sm:$0xff]
        %v883 = vld [vmem:[#allocation2 + $0x570] sm:$0xff]
        %v884 = vld [vmem:[#allocation2 + $0x578] sm:$0xff]
        %v885 = vld [vmem:[#allocation2 + $0x580] sm:$0xff]
        %v886 = vld [vmem:[#allocation2 + $0x588] sm:$0xff]
        %v887 = vld [vmem:[#allocation2 + $0x590] sm:$0xff]
        %v888 = vld [vmem:[#allocation2 + $0x598] sm:$0xff]
        %v889 = vld [vmem:[#allocation2 + $0x5a0] sm:$0xff]
        %v890 = vld [vmem:[#allocation2 + $0x5a8] sm:$0xff]
        %v891 = vld [vmem:[#allocation2 + $0x5b0] sm:$0xff]
        %v892 = vld [vmem:[#allocation2 + $0x5b8] sm:$0xff]
        %s893 = scalar_lea.vmem %s2, 16
        %v894 = vld [vmem:[%s893] ss:$8 sm:$0x3]
        %v896 = vlaneseq
        %v897 = vshrl.u32 %v896, 7
        %v898 = vsub.s32 0, %v897
        %v899 = vrot.slane %v894, %v898
        %v900 = vlaneseq
        %v901 = vshrl.u32 %v900, 7
        %v902 = vsub.s32 1, %v901
        %v903 = vrot.slane %v894, %v902
        %906 = vmatprep.subr.mxu0 %v862
        %907 = vmatpush1.msra.mxu0 %v861
        %908 = vmatprep.subr.mxu0 %v864
        %909 = vmatpush1.msra.mxu0 %v863
        %910 = vmatprep.subr.mxu0 %v866
        %911 = vmatpush1.msra.mxu0 %v865
        %912 = vmatprep.subr.mxu0 %v868
        %913 = vmatpush1.msra.mxu0 %v867
        %914 = vmatprep.subr.mxu0 %v870
        %915 = vmatpush1.msra.mxu0 %v869
        %916 = vmatprep.subr.mxu0 %v872
        %917 = vmatpush1.msra.mxu0 %v871
        %918 = vmatprep.subr.mxu0 %v874
        %919 = vmatpush1.msra.mxu0 %v873
        %920 = vmatprep.subr.mxu0 %v876
        %921 = vmatpush1.msra.mxu0 %v875
        %922 = vmatprep.subr.mxu0 %v878
        %923 = vmatpush1.msra.mxu0 %v877
        %924 = vmatprep.subr.mxu0 %v880
        %925 = vmatpush1.msra.mxu0 %v879
        %926 = vmatprep.subr.mxu0 %v882
        %927 = vmatpush1.msra.mxu0 %v881
        %928 = vmatprep.subr.mxu0 %v884
        %929 = vmatpush1.msra.mxu0 %v883
        %930 = vmatprep.subr.mxu0 %v886
        %931 = vmatpush1.msra.mxu0 %v885
        %932 = vmatprep.subr.mxu0 %v888
        %933 = vmatpush1.msra.mxu0 %v887
        %934 = vmatprep.subr.mxu0 %v890
        %935 = vmatpush1.msra.mxu0 %v889
        %936 = vmatprep.subr.mxu0 %v892
        %937 = vmatpush1.msra.mxu0 %v891
        %938 = vmatprep.subr.mxu0 0.0
        %939 = vmatpush1.msra.mxu0 0.0
        %940 = vmatprep.subr.mxu0 0.0
        %941 = vmatpush1.msra.mxu0 0.0
        %942 = vmatprep.subr.mxu0 0.0
        %943 = vmatpush1.msra.mxu0 0.0
        %944 = vmatprep.subr.mxu0 0.0
        %945 = vmatpush1.msra.mxu0 0.0
        %946 = vmatprep.subr.mxu0 0.0
        %947 = vmatpush1.msra.mxu0 0.0
        %948 = vmatprep.subr.mxu0 0.0
        %949 = vmatpush1.msra.mxu0 0.0
        %950 = vmatprep.subr.mxu0 0.0
        %951 = vmatpush1.msra.mxu0 0.0
        %952 = vmatprep.subr.mxu0 0.0
        %953 = vmatpush1.msra.mxu0 0.0
        %954 = vmatprep.subr.mxu0 0.0
        %955 = vmatpush1.msra.mxu0 0.0
        %956 = vmatprep.subr.mxu0 0.0
        %957 = vmatpush1.msra.mxu0 0.0
        %958 = vmatprep.subr.mxu0 0.0
        %959 = vmatpush1.msra.mxu0 0.0
        %960 = vmatprep.subr.mxu0 0.0
        %961 = vmatpush1.msra.mxu0 0.0
        %962 = vmatprep.subr.mxu0 0.0
        %963 = vmatpush1.msra.mxu0 0.0
        %964 = vmatprep.subr.mxu0 0.0
        %965 = vmatpush1.msra.mxu0 0.0
        %966 = vmatprep.subr.mxu0 0.0
        %967 = vmatpush1.msra.mxu0 0.0
        %968 = vmatprep.subr.mxu0 0.0
        %969 = vmatpush1.msra.mxu0 0.0
        %970 = vmatprep.mubr.f32.mxu0 0.0
        %971 = vmatmul.mubr.f32.gmra.mrb[0].mxu0 %v860
        %v972 = vpop.f32.mrb[0].mxu0
        %v973 = vadd.f32 %v899, %v972
        %v974 = vpop.f32.mrb[0].mxu0
        %v975 = vadd.f32 %v903, %v974
        %976 = vdwg.mxu0
        %977 = vst [vmem:[%s185] sm:$0xff] %v973
        %978 = vst [vmem:[%s185 + $0x8] sm:$0xff] %v975
        %p979 = scmp.lt.s32.totalorder %s15, 1
        %s980 = scalar_select %p979, %s15, 1
        %s981 = smul.addr %s980, 2
        %s982 = smul.addr %s981, 8
        %s983 = scalar_lea.vmem %s3, %s982
        // Predicated region
        $region37: #{mlp_module_forward.1} parent=31 // pred_check
          %p984 = pneg %p101
        $region38: #{mlp_module_forward.1} parent=31 // pred_check_branch
          %986 = sbr.rel (%p984) target = $region40
        $region39: #{mlp_module_forward.1} parent=31 // pred_region
          _
        $region40: #{mlp_module_forward.1} parent=31 // pred_fallthru
          _
      $region32: #{mlp_module_forward.1} parent=5 // pred_fallthru
        _
      %p987 = scmp.le.s32.totalorder 2, %s10
      // Predicated region
      $region41: #{mlp_module_forward.1} parent=5 // pred_check
        %p988 = pneg %p987
      $region42: #{mlp_module_forward.1} parent=5 // pred_check_branch
        %990 = sbr.rel (%p988) target = $region44
      $region43: #{mlp_module_forward.1} parent=5 // pred_region
        %s991 = ssub.s32 %s10, 2
        // Predicated region
        $region45: #{mlp_module_forward.1} parent=43 // pred_check
          %p992 = pneg %p107
        $region46: #{mlp_module_forward.1} parent=43 // pred_check_branch
          %994 = sbr.rel (%p992) target = $region48
        $region47: #{mlp_module_forward.1} parent=43 // pred_region
          %p995 = scmp.lt.s32.totalorder %s16, 1
          %s996 = scalar_select %p995, %s16, 1
          %s997 = smul.addr %s996, 2
          %s998 = smul.addr %s997, 8
          %s999 = scalar_lea.vmem %s3, %s998
        $region48: #{mlp_module_forward.1} parent=43 // pred_fallthru
          _
      $region44: #{mlp_module_forward.1} parent=5 // pred_fallthru
        _
    $region6: #{mlp_module_forward.1} parent=1 // loop_footer
      %s14 = sadd.s32 1, %s10
    $region7: #{mlp_module_forward.1} parent=1 // loop_footer_branch
      %9 = sbr.rel target = $region3
    $region8: #{mlp_module_forward.1} parent=1 // loop_exit
      _
    %1000 = vsyncpa [#allocation3], 1
    %s1001 = scalar_lea.sflag [#allocation3], 1
    %1002 = vsyncpa %s1001, 1

</llo_original>
